<compile_context>
chip_gen: v5e
topology: v5e:2x2
jax: 0.10.0
libtpu: 0.0.40
codegen_flags: <defaults>
</compile_context>

<pallas_src>
import functools

import jax
import jax.numpy as jnp
from jax import lax
from jax.experimental import pallas as pl
from jax.experimental.pallas import tpu as pltpu

_LANE = 128
_TARGET_TILE_BYTES = 4 << 20     # useful bytes per pipeline buffer
_PALLAS_MIN_BYTES = 4 << 20      # below ~4 MiB, plain XLA reduction wins


def _accumulate(acc_ref, x, width):
    """Add per-coordinate sums of x:(b_tile, width) into acc_ref:(b_tile, 3).

    `width` is a static power-of-two multiple of 384 = lcm(3, 128), so every
    fold offset is a multiple of 3 (coordinate alignment preserved) and of
    128 (lane-tile aligned slice, no relayout).  Accumulation is in float32.
    """
    w = width
    if w > 384:
        half = w // 2
        # Cast during the first fold so no full-width f32 copy is materialized.
        x = x[:, :half].astype(jnp.float32) + x[:, half:].astype(jnp.float32)
        w = half
    else:
        x = x.astype(jnp.float32)
    while w > 384:
        half = w // 2
        x = x[:, :half] + x[:, half:]
        w = half
    # x is now (b_tile, 384): 128 points, coordinates interleaved along lanes.
    lane = lax.broadcasted_iota(jnp.int32, (1, 384), 1)
    parts = [
        jnp.sum(jnp.where(lane % 3 == c, x, 0.0), axis=-1, keepdims=True)
        for c in range(3)
    ]
    acc_ref[...] += jnp.concatenate(parts, axis=-1)


def _mean_points_kernel(x_ref, o_ref, acc_ref, *, width, valid_width, inv_n):
    # x_ref:   (b_tile, width)  flat lane-dense tile, width = 3 * n_tile.
    # o_ref:   (b_tile, 3)      f32 partial-mean output block (split squeezed).
    # acc_ref: (b_tile, 3)      f32 accumulator scratch.
    split = pl.program_id(0)
    k = pl.program_id(2)
    kps = pl.num_programs(2)

    @pl.when(k == 0)
    def _init():
        acc_ref[...] = jnp.zeros_like(acc_ref)

    # Element offset of this tile along the flat 3*N axis.  Unclamped: the
    # index_map clamps the DMA block; the tail mask zeroes any overrun.
    start = (split * kps + k) * width
    is_full = (start + width) <= valid_width

    @pl.when(is_full)
    def _full_tile():
        _accumulate(acc_ref, x_ref[...], width)

    @pl.when(jnp.logical_not(is_full))
    def _tail_tile():
        # Only the final (partial / phantom) tile pays for the mask.
        lane = lax.broadcasted_iota(jnp.int32, (1, width), 1)
        mask = (start + lane) < valid_width
        _accumulate(acc_ref, jnp.where(mask, x_ref[...], 0), width)

    @pl.when(k == kps - 1)
    def _finalize():
        o_ref[...] = acc_ref[...] * inv_n


def _pick_n_tile(n_points, b_tile, itemsize):
    """Largest n_tile = 128 * 2^m so the (b_tile, 3*n_tile) tile stays near
    the per-buffer byte budget and does not grossly exceed N."""
    target_lanes = max(_TARGET_TILE_BYTES // max(b_tile * itemsize, 1), 3 * _LANE)
    n_tile = _LANE
    while (3 * n_tile * 2) <= target_lanes and n_tile < n_points:
        n_tile *= 2
    return n_tile


def _mean_over_points_pallas(xyz_3d, *, n_tile=None):
    """xyz_3d: (B, N, 3) -> (B, 3) mean over the points axis via Pallas."""
    B, N, D = xyz_3d.shape
    assert D == 3 and N > 0

    # Row-major collapse of the last two dims: free (no HBM copy), lane-dense.
    x_flat = xyz_3d.reshape(B, 3 * N)

    # Batch tile: full batch (always legal) or a multiple of 8 with a partial
    # last block (OOB rows are masked on the output store and never read back).
    b_tile = B if B <= 64 else 64
    b_blocks = pl.cdiv(B, b_tile)

    if n_tile is None:
        n_tile = _pick_n_tile(N, b_tile, xyz_3d.dtype.itemsize)
    m = n_tile // _LANE
    assert n_tile % _LANE == 0 and (m & (m - 1)) == 0, "n_tile must be 128*2^m"
    width = 3 * n_tile                      # multiple of 384 = lcm(3, 128)

    total_k = pl.cdiv(3 * N, width)
    # Give the parallel part of the grid >= 2 blocks when the batch axis has
    # only one, so both v7x TensorCores participate (harmless on v5e / v6e).
    n_splits = 2 if (b_blocks == 1 and total_k >= 2) else 1
    kps = pl.cdiv(total_k, n_splits)
    last_k = total_k - 1

    def x_map(s, b, k):
        # Clamp so the phantom trailing step of an uneven split stays
        # in-bounds; its contribution is zeroed by the in-kernel tail mask.
        return (b, jnp.minimum(s * kps + k, last_k))

    partials = pl.pallas_call(
        functools.partial(_mean_points_kernel, width=width,
                          valid_width=3 * N, inv_n=1.0 / float(N)),
        out_shape=jax.ShapeDtypeStruct((n_splits, B, 3), jnp.float32),
        grid_spec=pltpu.PrefetchScalarGridSpec(
            num_scalar_prefetch=0,
            grid=(n_splits, b_blocks, kps),
            in_specs=[pl.BlockSpec((b_tile, width), x_map)],
            out_specs=pl.BlockSpec((None, b_tile, 3), lambda s, b, k: (s, b, 0)),
            scratch_shapes=[pltpu.VMEM((b_tile, 3), jnp.float32)],
        ),
        compiler_params=pltpu.CompilerParams(
            dimension_semantics=("parallel", "parallel", "arbitrary"),
            vmem_limit_bytes=40 * 1024 * 1024,
        ),
    )(x_flat)

    center = partials[0] if n_splits == 1 else jnp.sum(partials, axis=0)
    return center.astype(xyz_3d.dtype)


def mean_encoder_forward(xyz, f=None, *, use_pallas=None, n_tile=None):
    """Exact output semantics of MeanEncoder.forward.

    xyz: (B, N, 3) or (N, 3).  f is accepted but (as in the torch module) has
    no effect on the returned values, so its transpose is skipped (dead work).
    Returns (center, center) with shape (B, 3) or (3,).
    """
    del f  # transposed-then-discarded in the reference module: no output effect

    if xyz.ndim == 3:
        x3, squeeze = xyz, False
    elif xyz.ndim == 2:
        x3, squeeze = xyz[None], True
    else:
        raise RuntimeError("not sure what to do with points of shape " + str(xyz.shape))

    assert x3.shape[-1] == 3

    if use_pallas is None:
        # Tiny inputs: custom-call launch + DMA setup dwarfs the work.
        use_pallas = x3.size * x3.dtype.itemsize >= _PALLAS_MIN_BYTES

    if use_pallas:
        center = _mean_over_points_pallas(x3, n_tile=n_tile)
    else:
        center = jnp.mean(x3, axis=1)

    if squeeze:
        center = center[0]

    assert center.shape[-1] == 3
    return (center, center)


if __name__ == "__main__":
    key = jax.random.PRNGKey(0)
    k_xyz, k_f, k_xyz2, k_big, k_mid = jax.random.split(key, 5)

    # Small demo shapes consistent with the module: batch=2, points=16, feat=4.
    B, N, C = 2, 16, 4
    xyz = jax.random.normal(k_xyz, (B, N, 3), dtype=jnp.float32)
    f = jax.random.normal(k_f, (B, N, C), dtype=jnp.float32)  # unused, as in torch

    # Force the Pallas path so the kernel is exercised even at tiny sizes.
    center, center2 = mean_encoder_forward(xyz, f, use_pallas=True)
    jax.block_until_ready(center)
    jax.block_until_ready(center2)
    ref = jnp.mean(xyz, axis=1)
    assert center.shape == (B, 3)
    assert jnp.allclose(center, ref, atol=1e-6)
    assert jnp.allclose(center2, ref, atol=1e-6)

    # Non-tile-aligned shape (exercises the in-kernel tail mask, no padding).
    B2, N2 = 3, 200
    xyz2 = jax.random.normal(k_xyz2, (B2, N2, 3), dtype=jnp.float32)
    c_pad, _ = mean_encoder_forward(xyz2, use_pallas=True)
    jax.block_until_ready(c_pad)
    assert jnp.allclose(c_pad, jnp.mean(xyz2, axis=1), atol=1e-5)

    # Small forced tile: multi-step reduction, 2-way split, full + tail tiles.
    xyz_big = jax.random.normal(k_big, (2, 1000, 3), dtype=jnp.float32)
    c_big, _ = mean_encoder_forward(xyz_big, use_pallas=True, n_tile=128)
    jax.block_until_ready(c_big)
    assert jnp.allclose(c_big, jnp.mean(xyz_big, axis=1), atol=1e-5)

    # Uneven split (phantom clamped block) + non-multiple-of-8 batch.
    xyz_mid = jax.random.normal(k_mid, (10, 300, 3), dtype=jnp.float32)
    c_mid, _ = mean_encoder_forward(xyz_mid, use_pallas=True, n_tile=128)
    jax.block_until_ready(c_mid)
    assert jnp.allclose(c_mid, jnp.mean(xyz_mid, axis=1), atol=1e-5)

    # bf16 input: f32 accumulation inside the kernel, bf16 result.
    xyz_bf16 = xyz2.astype(jnp.bfloat16)
    c_bf, _ = mean_encoder_forward(xyz_bf16, use_pallas=True)
    jax.block_until_ready(c_bf)
    assert jnp.allclose(c_bf.astype(jnp.float32),
                        jnp.mean(xyz_bf16.astype(jnp.float32), axis=1), atol=1e-2)

    # 2D (N, 3) path.
    c2, _ = mean_encoder_forward(xyz[0], use_pallas=True)
    jax.block_until_ready(c2)
    assert c2.shape == (3,)
    assert jnp.allclose(c2, jnp.mean(xyz[0], axis=0), atol=1e-6)

    # Auto-dispatch path (tiny input -> plain jnp.mean, matching semantics).
    c_auto, _ = mean_encoder_forward(xyz, f)
    jax.block_until_ready(c_auto)
    assert jnp.allclose(c_auto, ref, atol=1e-6)

    print("KERNEL_OK")
</pallas_src>

<mosaic_0001>
module attributes {stable_mosaic.version = 11 : i64} {
  func.func @_mean_points_kernel(%arg0: i32, %arg1: i32, %arg2: i32, %arg3: memref<2x384xf32, #tpu.memory_space<vmem>>, %arg4: memref<1x2x3xf32, #tpu.memory_space<vmem>>, %arg5: memref<2x3xf32, #tpu.memory_space<vmem>>) attributes {dimension_semantics = [#tpu.dimension_semantics<parallel>, #tpu.dimension_semantics<parallel>, #tpu.dimension_semantics<arbitrary>], iteration_bounds = array<i64: 1, 1, 1>, scalar_prefetch = 0 : i64, scratch_operands = 1 : i64, tpu.core_type = #tpu.core_type<tc>, window_params = [{transform_indices = @transform_0, window_bounds = array<i64: 2, 384>}, {transform_indices = @transform_1, window_bounds = array<i64: 1, 2, 3>}]} {
    %c0_i32 = arith.constant 0 : i32
    %0 = arith.cmpi eq, %arg2, %c0_i32 : i32
    %1 = arith.extui %0 : i1 to i32
    %c0_i32_0 = arith.constant 0 : i32
    %2 = arith.cmpi ne, %1, %c0_i32_0 : i32
    scf.if %2 {
      %cst = arith.constant 0.000000e+00 : f32
      %16 = vector.broadcast %cst : f32 to vector<2x3xf32>
      %c0 = arith.constant 0 : index
      %c0_6 = arith.constant 0 : index
      %17 = vector.load %arg5[%c0, %c0_6] : memref<2x3xf32, #tpu.memory_space<vmem>>, vector<2x3xf32>
      tpu.vector_store %arg5[%c0, %c0_6], %16 {strides = array<i32>} : memref<2x3xf32, #tpu.memory_space<vmem>>, vector<2x3xf32>,
    } else {
    }
    %c1_i32 = arith.constant 1 : i32
    %3 = arith.muli %arg0, %c1_i32 : i32
    %4 = arith.addi %3, %arg2 : i32
    %c384_i32 = arith.constant 384 : i32
    %5 = arith.muli %4, %c384_i32 : i32
    %c384_i32_1 = arith.constant 384 : i32
    %6 = arith.addi %5, %c384_i32_1 : i32
    %c48_i32 = arith.constant 48 : i32
    %7 = arith.cmpi sle, %6, %c48_i32 : i32
    %8 = arith.extui %7 : i1 to i32
    %c0_i32_2 = arith.constant 0 : i32
    %9 = arith.cmpi ne, %8, %c0_i32_2 : i32
    scf.if %9 {
      %c0 = arith.constant 0 : index
      %c0_6 = arith.constant 0 : index
      %16 = vector.load %arg3[%c0, %c0_6] : memref<2x384xf32, #tpu.memory_space<vmem>>, vector<2x384xf32>
      %17 = tpu.iota {dimensions = array<i32: 1>} : vector<1x384xi32>
      %c3_i32 = arith.constant 3 : i32
      %c0_i32_7 = arith.constant 0 : i32
      %18 = arith.cmpi eq, %c3_i32, %c0_i32_7 : i32
      %c1_i32_8 = arith.constant 1 : i32
      %19 = arith.select %18, %c1_i32_8, %c3_i32 : i32
      %20 = vector.broadcast %19 : i32 to vector<1x384xi32>
      %21 = arith.remsi %17, %20 : vector<1x384xi32>
      %c0_i32_9 = arith.constant 0 : i32
      %22 = vector.broadcast %c0_i32_9 : i32 to vector<1x384xi32>
      %23 = arith.cmpi ne, %21, %22 : vector<1x384xi32>
      %c0_i32_10 = arith.constant 0 : i32
      %24 = vector.broadcast %c0_i32_10 : i32 to vector<1x384xi32>
      %25 = arith.cmpi slt, %21, %24 : vector<1x384xi32>
      %c0_i32_11 = arith.constant 0 : i32
      %26 = arith.cmpi slt, %19, %c0_i32_11 : i32
      %27 = vector.broadcast %26 : i1 to vector<1x384xi1>
      %28 = vector.broadcast %27 : vector<1x384xi1> to vector<1x384xi1>
      %29 = arith.xori %25, %28 : vector<1x384xi1>
      %30 = arith.andi %29, %23 : vector<1x384xi1>
      %31 = vector.broadcast %19 : i32 to vector<1x384xi32>
      %32 = arith.addi %21, %31 : vector<1x384xi32>
      %33 = arith.select %30, %32, %21 : vector<1x384xi1>, vector<1x384xi32>
      %c0_i32_12 = arith.constant 0 : i32
      %34 = vector.broadcast %c0_i32_12 : i32 to vector<1x384xi32>
      %35 = arith.cmpi eq, %33, %34 : vector<1x384xi32>
      %cst = arith.constant 0.000000e+00 : f32
      %36 = vector.shape_cast %35 : vector<1x384xi1> to vector<1x384xi1>
      %37 = vector.broadcast %36 : vector<1x384xi1> to vector<2x384xi1>
      %38 = vector.broadcast %cst : f32 to vector<2x384xf32>
      %39 = arith.select %37, %16, %38 : vector<2x384xi1>, vector<2x384xf32>
      %cst_13 = arith.constant dense<0.000000e+00> : vector<2xf32>
      %40 = vector.multi_reduction <add>, %39, %cst_13 [1] : vector<2x384xf32> to vector<2xf32>
      %41 = vector.shape_cast %40 : vector<2xf32> to vector<2x1xf32>
      %c3_i32_14 = arith.constant 3 : i32
      %c0_i32_15 = arith.constant 0 : i32
      %42 = arith.cmpi eq, %c3_i32_14, %c0_i32_15 : i32
      %c1_i32_16 = arith.constant 1 : i32
      %43 = arith.select %42, %c1_i32_16, %c3_i32_14 : i32
      %44 = vector.broadcast %43 : i32 to vector<1x384xi32>
      %45 = arith.remsi %17, %44 : vector<1x384xi32>
      %c0_i32_17 = arith.constant 0 : i32
      %46 = vector.broadcast %c0_i32_17 : i32 to vector<1x384xi32>
      %47 = arith.cmpi ne, %45, %46 : vector<1x384xi32>
      %c0_i32_18 = arith.constant 0 : i32
      %48 = vector.broadcast %c0_i32_18 : i32 to vector<1x384xi32>
      %49 = arith.cmpi slt, %45, %48 : vector<1x384xi32>
      %c0_i32_19 = arith.constant 0 : i32
      %50 = arith.cmpi slt, %43, %c0_i32_19 : i32
      %51 = vector.broadcast %50 : i1 to vector<1x384xi1>
      %52 = vector.broadcast %51 : vector<1x384xi1> to vector<1x384xi1>
      %53 = arith.xori %49, %52 : vector<1x384xi1>
      %54 = arith.andi %53, %47 : vector<1x384xi1>
      %55 = vector.broadcast %43 : i32 to vector<1x384xi32>
      %56 = arith.addi %45, %55 : vector<1x384xi32>
      %57 = arith.select %54, %56, %45 : vector<1x384xi1>, vector<1x384xi32>
      %c1_i32_20 = arith.constant 1 : i32
      %58 = vector.broadcast %c1_i32_20 : i32 to vector<1x384xi32>
      %59 = arith.cmpi eq, %57, %58 : vector<1x384xi32>
      %cst_21 = arith.constant 0.000000e+00 : f32
      %60 = vector.shape_cast %59 : vector<1x384xi1> to vector<1x384xi1>
      %61 = vector.broadcast %60 : vector<1x384xi1> to vector<2x384xi1>
      %62 = vector.broadcast %cst_21 : f32 to vector<2x384xf32>
      %63 = arith.select %61, %16, %62 : vector<2x384xi1>, vector<2x384xf32>
      %cst_22 = arith.constant dense<0.000000e+00> : vector<2xf32>
      %64 = vector.multi_reduction <add>, %63, %cst_22 [1] : vector<2x384xf32> to vector<2xf32>
      %65 = vector.shape_cast %64 : vector<2xf32> to vector<2x1xf32>
      %c3_i32_23 = arith.constant 3 : i32
      %c0_i32_24 = arith.constant 0 : i32
      %66 = arith.cmpi eq, %c3_i32_23, %c0_i32_24 : i32
      %c1_i32_25 = arith.constant 1 : i32
      %67 = arith.select %66, %c1_i32_25, %c3_i32_23 : i32
      %68 = vector.broadcast %67 : i32 to vector<1x384xi32>
      %69 = arith.remsi %17, %68 : vector<1x384xi32>
      %c0_i32_26 = arith.constant 0 : i32
      %70 = vector.broadcast %c0_i32_26 : i32 to vector<1x384xi32>
      %71 = arith.cmpi ne, %69, %70 : vector<1x384xi32>
      %c0_i32_27 = arith.constant 0 : i32
      %72 = vector.broadcast %c0_i32_27 : i32 to vector<1x384xi32>
      %73 = arith.cmpi slt, %69, %72 : vector<1x384xi32>
      %c0_i32_28 = arith.constant 0 : i32
      %74 = arith.cmpi slt, %67, %c0_i32_28 : i32
      %75 = vector.broadcast %74 : i1 to vector<1x384xi1>
      %76 = vector.broadcast %75 : vector<1x384xi1> to vector<1x384xi1>
      %77 = arith.xori %73, %76 : vector<1x384xi1>
      %78 = arith.andi %77, %71 : vector<1x384xi1>
      %79 = vector.broadcast %67 : i32 to vector<1x384xi32>
      %80 = arith.addi %69, %79 : vector<1x384xi32>
      %81 = arith.select %78, %80, %69 : vector<1x384xi1>, vector<1x384xi32>
      %c2_i32 = arith.constant 2 : i32
      %82 = vector.broadcast %c2_i32 : i32 to vector<1x384xi32>
      %83 = arith.cmpi eq, %81, %82 : vector<1x384xi32>
      %cst_29 = arith.constant 0.000000e+00 : f32
      %84 = vector.shape_cast %83 : vector<1x384xi1> to vector<1x384xi1>
      %85 = vector.broadcast %84 : vector<1x384xi1> to vector<2x384xi1>
      %86 = vector.broadcast %cst_29 : f32 to vector<2x384xf32>
      %87 = arith.select %85, %16, %86 : vector<2x384xi1>, vector<2x384xf32>
      %cst_30 = arith.constant dense<0.000000e+00> : vector<2xf32>
      %88 = vector.multi_reduction <add>, %87, %cst_30 [1] : vector<2x384xf32> to vector<2xf32>
      %89 = vector.shape_cast %88 : vector<2xf32> to vector<2x1xf32>
      %c0_31 = arith.constant 0 : index
      %c0_32 = arith.constant 0 : index
      %90 = vector.load %arg5[%c0_31, %c0_32] : memref<2x3xf32, #tpu.memory_space<vmem>>, vector<2x3xf32>
      %91 = tpu.concatenate %41, %65, %89 in 1 : vector<2x1xf32>, vector<2x1xf32>, vector<2x1xf32> -> vector<2x3xf32>
      %92 = arith.addf %90, %91 : vector<2x3xf32>
      %c0_33 = arith.constant 0 : index
      %c0_34 = arith.constant 0 : index
      %93 = vector.load %arg5[%c0_33, %c0_34] : memref<2x3xf32, #tpu.memory_space<vmem>>, vector<2x3xf32>
      tpu.vector_store %arg5[%c0_33, %c0_34], %92 {strides = array<i32>} : memref<2x3xf32, #tpu.memory_space<vmem>>, vector<2x3xf32>,
    } else {
    }
    %true = arith.constant true
    %10 = arith.xori %7, %true : i1
    %11 = arith.extui %10 : i1 to i32
    %c0_i32_3 = arith.constant 0 : i32
    %12 = arith.cmpi ne, %11, %c0_i32_3 : i32
    scf.if %12 {
      %16 = tpu.iota {dimensions = array<i32: 1>} : vector<1x384xi32>
      %17 = vector.broadcast %5 : i32 to vector<1x384xi32>
      %18 = arith.addi %17, %16 : vector<1x384xi32>
      %c48_i32_6 = arith.constant 48 : i32
      %19 = vector.broadcast %c48_i32_6 : i32 to vector<1x384xi32>
      %20 = arith.cmpi slt, %18, %19 : vector<1x384xi32>
      %c0 = arith.constant 0 : index
      %c0_7 = arith.constant 0 : index
      %21 = vector.load %arg3[%c0, %c0_7] : memref<2x384xf32, #tpu.memory_space<vmem>>, vector<2x384xf32>
      %c0_i32_8 = arith.constant 0 : i32
      %22 = arith.sitofp %c0_i32_8 : i32 to f32
      %23 = vector.shape_cast %20 : vector<1x384xi1> to vector<1x384xi1>
      %24 = vector.broadcast %23 : vector<1x384xi1> to vector<2x384xi1>
      %25 = vector.broadcast %22 : f32 to vector<2x384xf32>
      %26 = arith.select %24, %21, %25 : vector<2x384xi1>, vector<2x384xf32>
      %27 = tpu.iota {dimensions = array<i32: 1>} : vector<1x384xi32>
      %c3_i32 = arith.constant 3 : i32
      %c0_i32_9 = arith.constant 0 : i32
      %28 = arith.cmpi eq, %c3_i32, %c0_i32_9 : i32
      %c1_i32_10 = arith.constant 1 : i32
      %29 = arith.select %28, %c1_i32_10, %c3_i32 : i32
      %30 = vector.broadcast %29 : i32 to vector<1x384xi32>
      %31 = arith.remsi %27, %30 : vector<1x384xi32>
      %c0_i32_11 = arith.constant 0 : i32
      %32 = vector.broadcast %c0_i32_11 : i32 to vector<1x384xi32>
      %33 = arith.cmpi ne, %31, %32 : vector<1x384xi32>
      %c0_i32_12 = arith.constant 0 : i32
      %34 = vector.broadcast %c0_i32_12 : i32 to vector<1x384xi32>
      %35 = arith.cmpi slt, %31, %34 : vector<1x384xi32>
      %c0_i32_13 = arith.constant 0 : i32
      %36 = arith.cmpi slt, %29, %c0_i32_13 : i32
      %37 = vector.broadcast %36 : i1 to vector<1x384xi1>
      %38 = vector.broadcast %37 : vector<1x384xi1> to vector<1x384xi1>
      %39 = arith.xori %35, %38 : vector<1x384xi1>
      %40 = arith.andi %39, %33 : vector<1x384xi1>
      %41 = vector.broadcast %29 : i32 to vector<1x384xi32>
      %42 = arith.addi %31, %41 : vector<1x384xi32>
      %43 = arith.select %40, %42, %31 : vector<1x384xi1>, vector<1x384xi32>
      %c0_i32_14 = arith.constant 0 : i32
      %44 = vector.broadcast %c0_i32_14 : i32 to vector<1x384xi32>
      %45 = arith.cmpi eq, %43, %44 : vector<1x384xi32>
      %cst = arith.constant 0.000000e+00 : f32
      %46 = vector.shape_cast %45 : vector<1x384xi1> to vector<1x384xi1>
      %47 = vector.broadcast %46 : vector<1x384xi1> to vector<2x384xi1>
      %48 = vector.broadcast %cst : f32 to vector<2x384xf32>
      %49 = arith.select %47, %26, %48 : vector<2x384xi1>, vector<2x384xf32>
      %cst_15 = arith.constant dense<0.000000e+00> : vector<2xf32>
      %50 = vector.multi_reduction <add>, %49, %cst_15 [1] : vector<2x384xf32> to vector<2xf32>
      %51 = vector.shape_cast %50 : vector<2xf32> to vector<2x1xf32>
      %c3_i32_16 = arith.constant 3 : i32
      %c0_i32_17 = arith.constant 0 : i32
      %52 = arith.cmpi eq, %c3_i32_16, %c0_i32_17 : i32
      %c1_i32_18 = arith.constant 1 : i32
      %53 = arith.select %52, %c1_i32_18, %c3_i32_16 : i32
      %54 = vector.broadcast %53 : i32 to vector<1x384xi32>
      %55 = arith.remsi %27, %54 : vector<1x384xi32>
      %c0_i32_19 = arith.constant 0 : i32
      %56 = vector.broadcast %c0_i32_19 : i32 to vector<1x384xi32>
      %57 = arith.cmpi ne, %55, %56 : vector<1x384xi32>
      %c0_i32_20 = arith.constant 0 : i32
      %58 = vector.broadcast %c0_i32_20 : i32 to vector<1x384xi32>
      %59 = arith.cmpi slt, %55, %58 : vector<1x384xi32>
      %c0_i32_21 = arith.constant 0 : i32
      %60 = arith.cmpi slt, %53, %c0_i32_21 : i32
      %61 = vector.broadcast %60 : i1 to vector<1x384xi1>
      %62 = vector.broadcast %61 : vector<1x384xi1> to vector<1x384xi1>
      %63 = arith.xori %59, %62 : vector<1x384xi1>
      %64 = arith.andi %63, %57 : vector<1x384xi1>
      %65 = vector.broadcast %53 : i32 to vector<1x384xi32>
      %66 = arith.addi %55, %65 : vector<1x384xi32>
      %67 = arith.select %64, %66, %55 : vector<1x384xi1>, vector<1x384xi32>
      %c1_i32_22 = arith.constant 1 : i32
      %68 = vector.broadcast %c1_i32_22 : i32 to vector<1x384xi32>
      %69 = arith.cmpi eq, %67, %68 : vector<1x384xi32>
      %cst_23 = arith.constant 0.000000e+00 : f32
      %70 = vector.shape_cast %69 : vector<1x384xi1> to vector<1x384xi1>
      %71 = vector.broadcast %70 : vector<1x384xi1> to vector<2x384xi1>
      %72 = vector.broadcast %cst_23 : f32 to vector<2x384xf32>
      %73 = arith.select %71, %26, %72 : vector<2x384xi1>, vector<2x384xf32>
      %cst_24 = arith.constant dense<0.000000e+00> : vector<2xf32>
      %74 = vector.multi_reduction <add>, %73, %cst_24 [1] : vector<2x384xf32> to vector<2xf32>
      %75 = vector.shape_cast %74 : vector<2xf32> to vector<2x1xf32>
      %c3_i32_25 = arith.constant 3 : i32
      %c0_i32_26 = arith.constant 0 : i32
      %76 = arith.cmpi eq, %c3_i32_25, %c0_i32_26 : i32
      %c1_i32_27 = arith.constant 1 : i32
      %77 = arith.select %76, %c1_i32_27, %c3_i32_25 : i32
      %78 = vector.broadcast %77 : i32 to vector<1x384xi32>
      %79 = arith.remsi %27, %78 : vector<1x384xi32>
      %c0_i32_28 = arith.constant 0 : i32
      %80 = vector.broadcast %c0_i32_28 : i32 to vector<1x384xi32>
      %81 = arith.cmpi ne, %79, %80 : vector<1x384xi32>
      %c0_i32_29 = arith.constant 0 : i32
      %82 = vector.broadcast %c0_i32_29 : i32 to vector<1x384xi32>
      %83 = arith.cmpi slt, %79, %82 : vector<1x384xi32>
      %c0_i32_30 = arith.constant 0 : i32
      %84 = arith.cmpi slt, %77, %c0_i32_30 : i32
      %85 = vector.broadcast %84 : i1 to vector<1x384xi1>
      %86 = vector.broadcast %85 : vector<1x384xi1> to vector<1x384xi1>
      %87 = arith.xori %83, %86 : vector<1x384xi1>
      %88 = arith.andi %87, %81 : vector<1x384xi1>
      %89 = vector.broadcast %77 : i32 to vector<1x384xi32>
      %90 = arith.addi %79, %89 : vector<1x384xi32>
      %91 = arith.select %88, %90, %79 : vector<1x384xi1>, vector<1x384xi32>
      %c2_i32 = arith.constant 2 : i32
      %92 = vector.broadcast %c2_i32 : i32 to vector<1x384xi32>
      %93 = arith.cmpi eq, %91, %92 : vector<1x384xi32>
      %cst_31 = arith.constant 0.000000e+00 : f32
      %94 = vector.shape_cast %93 : vector<1x384xi1> to vector<1x384xi1>
      %95 = vector.broadcast %94 : vector<1x384xi1> to vector<2x384xi1>
      %96 = vector.broadcast %cst_31 : f32 to vector<2x384xf32>
      %97 = arith.select %95, %26, %96 : vector<2x384xi1>, vector<2x384xf32>
      %cst_32 = arith.constant dense<0.000000e+00> : vector<2xf32>
      %98 = vector.multi_reduction <add>, %97, %cst_32 [1] : vector<2x384xf32> to vector<2xf32>
      %99 = vector.shape_cast %98 : vector<2xf32> to vector<2x1xf32>
      %c0_33 = arith.constant 0 : index
      %c0_34 = arith.constant 0 : index
      %100 = vector.load %arg5[%c0_33, %c0_34] : memref<2x3xf32, #tpu.memory_space<vmem>>, vector<2x3xf32>
      %101 = tpu.concatenate %51, %75, %99 in 1 : vector<2x1xf32>, vector<2x1xf32>, vector<2x1xf32> -> vector<2x3xf32>
      %102 = arith.addf %100, %101 : vector<2x3xf32>
      %c0_35 = arith.constant 0 : index
      %c0_36 = arith.constant 0 : index
      %103 = vector.load %arg5[%c0_35, %c0_36] : memref<2x3xf32, #tpu.memory_space<vmem>>, vector<2x3xf32>
      tpu.vector_store %arg5[%c0_35, %c0_36], %102 {strides = array<i32>} : memref<2x3xf32, #tpu.memory_space<vmem>>, vector<2x3xf32>,
    } else {
    }
    %c0_i32_4 = arith.constant 0 : i32
    %13 = arith.cmpi eq, %arg2, %c0_i32_4 : i32
    %14 = arith.extui %13 : i1 to i32
    %c0_i32_5 = arith.constant 0 : i32
    %15 = arith.cmpi ne, %14, %c0_i32_5 : i32
    scf.if %15 {
      %c0 = arith.constant 0 : index
      %c0_6 = arith.constant 0 : index
      %16 = vector.load %arg5[%c0, %c0_6] : memref<2x3xf32, #tpu.memory_space<vmem>>, vector<2x3xf32>
      %cst = arith.constant 6.250000e-02 : f32
      %17 = vector.broadcast %cst : f32 to vector<2x3xf32>
      %18 = arith.mulf %16, %17 : vector<2x3xf32>
      %c0_7 = arith.constant 0 : index
      %c0_8 = arith.constant 0 : index
      %c0_9 = arith.constant 0 : index
      %19 = vector.load %arg4[%c0_7, %c0_8, %c0_9] : memref<1x2x3xf32, #tpu.memory_space<vmem>>, vector<1x2x3xf32>
      %20 = vector.shape_cast %19 : vector<1x2x3xf32> to vector<2x3xf32>
      %21 = vector.shape_cast %18 : vector<2x3xf32> to vector<1x2x3xf32>
      tpu.vector_store %arg4[%c0_7, %c0_8, %c0_9], %21 {strides = array<i32>} : memref<1x2x3xf32, #tpu.memory_space<vmem>>, vector<1x2x3xf32>,
    } else {
    }
    return
  }
  func.func @transform_0(%arg0: i32, %arg1: i32, %arg2: i32) -> (i32, i32) {
    %c1_i32 = arith.constant 1 : i32
    %0 = arith.muli %arg0, %c1_i32 : i32
    %1 = arith.addi %0, %arg2 : i32
    %c0_i32 = arith.constant 0 : i32
    %2 = arith.minsi %1, %c0_i32 : i32
    %c0_i32_0 = arith.constant 0 : i32
    return %arg1, %2 : i32, i32
  }
  func.func @transform_1(%arg0: i32, %arg1: i32, %arg2: i32) -> (i32, i32, i32) {
    %c0_i32 = arith.constant 0 : i32
    %c0_i32_0 = arith.constant 0 : i32
    return %arg0, %arg1, %c0_i32 : i32, i32, i32
  }
}

</mosaic_0001>

<llo_original>
// kernel: tpu_custom_call.1
$region0: #{tpu_custom_call.1}
  #allocation0 [shape = 'u32[]', space=smem, size = 0x4, offset = 0x4, fixed_abs, tag = 'smem constant byte address 0x4 - core index']
  #allocation1 [shape = 'u32[72,128]{1,0:T(1,128)}', space=vmem, size = 0x9000, scoped, tag = 'internal scratch']
  #allocation2 [shape = 'f32[2,3]{1,0:T(2,128)}', space=vmem, size = 0x400, scoped, tag = 'scratch operand']
  %s0 = inlined_call_operand.hbm [shape: f32[2,48], index: 0, kind: input, shape index: {}]
  %s1 = inlined_call_operand.hbm [shape: f32[1,2,3], index: 1, kind: output, shape index: {}]
  %s2 = sld [smem:[#allocation0]]
  $region34: #{tpu_custom_call.1} parent=0
    _
  %s4 = ssub.s32 1, %s2
  %s5 = scalar_select 0, %s4, %s2
  $region1: #{tpu_custom_call.1} parent=0
    #allocation3 [shape = 'u8[3072]{0}', space=vmem, size = 0xc00, scoped, tag = 'input window, operand 0, single buffered']
    #allocation4 [shape = 's32[1]{0}', space=sflag, size = 0x4, scoped, tag = 'scoped memory for tpu_custom_call.1']
    #allocation5 [shape = 's32[1]{0}', space=sflag, size = 0x4, scoped, tag = 'scoped memory for tpu_custom_call.1']
    #allocation6 [shape = 'u8[1024]{0}', space=vmem, size = 0x400, scoped, tag = 'output window, operand 0, single buffered']
    %6 = vsyncpa [#allocation4], 0
    %7 = vsyncpa [#allocation5], 0
    // Predicated region
    $region2: #{tpu_custom_call.1} parent=1 // pred_check
      _
    $region3: #{tpu_custom_call.1} parent=1 // pred_check_branch
      %9 = sbr.rel (0) target = $region5
    $region4: #{tpu_custom_call.1} parent=1 // pred_region
      %s10 = sadd.s32 0, 0
      %p11 = scmp.lt.s32.totalorder %s10, 0
      %s12 = scalar_select %p11, %s10, 0
      %s13 = smul.u32 3, %s12
      %s14 = ssub.s32 1, %s13
      %s15 = smul.u32 2, %s14
      %s16 = ssub.s32 6, %s15
      %s17 = sshll.u32 %s16, 4
      %18 = vsyncadd [#allocation4], %s17
      %p19 = scmp.ne.s32.totalorder 0, %s15
      %s20 = smul.addr %s13, 2
      %s21 = scalar_lea.hbm %s0, %s20
      %s22 = smul.u32 %s14, 2
      %s23 = sshll.u32 %s22, 4
      %s24 = sshll.u32 %s21, 4
      %s25 = int_to_ptr.hbm [resolvable:$true] %s24
      %s26 = sshll.u32 [#allocation3], 4
      %s27 = int_to_ptr.vmem [resolvable:$true] %s26
      %29 = dma.hbm_to_vmem [thread:$0]  (%p19), %s25, %s23, %s27, [#allocation4]
    $region5: #{tpu_custom_call.1} parent=1 // pred_fallthru
      _
    // Predicated region
    $region6: #{tpu_custom_call.1} parent=1 // pred_check
      _
    $region7: #{tpu_custom_call.1} parent=1 // pred_check_branch
      %31 = sbr.rel (0) target = $region9
    $region8: #{tpu_custom_call.1} parent=1 // pred_region
      %33 = dma.done [#allocation4], 96
    $region9: #{tpu_custom_call.1} parent=1 // pred_fallthru
      _
    %s34 = sadd.s32 0, 0
    %p35 = scmp.lt.s32.totalorder %s34, 0
    %s36 = scalar_select %p35, %s34, 0
    %s37 = smul.u32 3, %s36
    %s38 = ssub.s32 1, %s37
    %s39 = smul.u32 2, %s38
    %p40 = scmp.eq.s32.totalorder 0, 0
    // Predicated region
    $region10: #{tpu_custom_call.1} parent=1 // pred_check
      %p41 = pneg %p40
    $region11: #{tpu_custom_call.1} parent=1 // pred_check_branch
      %43 = sbr.rel (%p41) target = $region13
    $region12: #{tpu_custom_call.1} parent=1 // pred_region
      %vm44 = vcmask 17408
      %45 = vst.msk [vmem:[#allocation2] sm:$0x3] %vm44, 0.0
    $region13: #{tpu_custom_call.1} parent=1 // pred_fallthru
      _
    %s46 = sadd.s32 0, 0
    %s47 = smul.u32 %s46, 384
    %s48 = sadd.s32 %s47, 384
    %p49 = scmp.le.s32.totalorder %s48, 48
    // Predicated region
    $region14: #{tpu_custom_call.1} parent=1 // pred_check
      %p50 = pneg %p49
    $region15: #{tpu_custom_call.1} parent=1 // pred_check_branch
      %52 = sbr.rel (%p50) target = $region17
    $region16: #{tpu_custom_call.1} parent=1 // pred_region
      %v53 = vld [vmem:[#allocation3] sm:$0x3f]
      %v54 = vlaneseq
      %v55 = vand.u32 %v54, 127
      %v56 = vadd.s32 %v55, 128
      %v57 = vadd.s32 %v55, 256
      %vm58 = vcmp.lt.s32.totalorder %v55, 0
      %v59 = vsub.s32 0, %v55
      %v60 = vsel %vm58, %v59, %v55
      %v61 = vand.u32 %v60, 65535
      %v62 = vshrl.u32 %v60, 16
      %v64 = vmul.u32 %v61, 43691
      %v65 = vmul.u32 %v61, 43690
      %v66 = vmul.u32 %v62, 43691
      %v67 = vmul.u32 %v62, 43690
      %v68 = vshll.u32 %v65, 16
      %v69 = vshrl.u32 %v65, 16
      %v70 = vshll.u32 %v66, 16
      %v71 = vshrl.u32 %v66, 16
      %vm72 = vc.u32 %v64, %v68
      %v73 = vsel %vm72, 1, 0
      %v74 = vadd.s32 %v64, %v68
      %v75 = vadd.s32 %v67, %v73
      %vm76 = vc.u32 %v74, %v70
      %v77 = vsel %vm76, 1, 0
      %v78 = vadd.s32 %v74, %v70
      %v79 = vadd.s32 %v75, %v77
      %v80 = vadd.s32 %v79, %v69
      %v81 = vadd.s32 %v80, %v71
      %v82 = vshrl.u32 %v81, 1
      %v83 = vmul.u32 %v82, 3
      %v84 = vsub.s32 %v60, %v83
      %v85 = vsub.s32 0, %v84
      %v86 = vsel %vm58, %v85, %v84
      %vm87 = vcmp.lt.s32.totalorder %v56, 0
      %v88 = vsub.s32 0, %v56
      %v89 = vsel %vm87, %v88, %v56
      %v90 = vand.u32 %v89, 65535
      %v91 = vshrl.u32 %v89, 16
      %v93 = vmul.u32 %v90, 43691
      %v94 = vmul.u32 %v90, 43690
      %v95 = vmul.u32 %v91, 43691
      %v96 = vmul.u32 %v91, 43690
      %v97 = vshll.u32 %v94, 16
      %v98 = vshrl.u32 %v94, 16
      %v99 = vshll.u32 %v95, 16
      %v100 = vshrl.u32 %v95, 16
      %vm101 = vc.u32 %v93, %v97
      %v102 = vsel %vm101, 1, 0
      %v103 = vadd.s32 %v93, %v97
      %v104 = vadd.s32 %v96, %v102
      %vm105 = vc.u32 %v103, %v99
      %v106 = vsel %vm105, 1, 0
      %v107 = vadd.s32 %v103, %v99
      %v108 = vadd.s32 %v104, %v106
      %v109 = vadd.s32 %v108, %v98
      %v110 = vadd.s32 %v109, %v100
      %v111 = vshrl.u32 %v110, 1
      %v112 = vmul.u32 %v111, 3
      %v113 = vsub.s32 %v89, %v112
      %v114 = vsub.s32 0, %v113
      %v115 = vsel %vm87, %v114, %v113
      %vm116 = vcmp.lt.s32.totalorder %v57, 0
      %v117 = vsub.s32 0, %v57
      %v118 = vsel %vm116, %v117, %v57
      %v119 = vand.u32 %v118, 65535
      %v120 = vshrl.u32 %v118, 16
      %v122 = vmul.u32 %v119, 43691
      %v123 = vmul.u32 %v119, 43690
      %v124 = vmul.u32 %v120, 43691
      %v125 = vmul.u32 %v120, 43690
      %v126 = vshll.u32 %v123, 16
      %v127 = vshrl.u32 %v123, 16
      %v128 = vshll.u32 %v124, 16
      %v129 = vshrl.u32 %v124, 16
      %vm130 = vc.u32 %v122, %v126
      %v131 = vsel %vm130, 1, 0
      %v132 = vadd.s32 %v122, %v126
      %v133 = vadd.s32 %v125, %v131
      %vm134 = vc.u32 %v132, %v128
      %v135 = vsel %vm134, 1, 0
      %v136 = vadd.s32 %v132, %v128
      %v137 = vadd.s32 %v133, %v135
      %v138 = vadd.s32 %v137, %v127
      %v139 = vadd.s32 %v138, %v129
      %v140 = vshrl.u32 %v139, 1
      %v141 = vmul.u32 %v140, 3
      %v142 = vsub.s32 %v118, %v141
      %v143 = vsub.s32 0, %v142
      %v144 = vsel %vm116, %v143, %v142
      %vm145 = vcmp.ne.s32.totalorder %v86, 0
      %vm146 = vcmp.ne.s32.totalorder %v115, 0
      %vm147 = vcmp.ne.s32.totalorder %v144, 0
      %vm148 = vcmp.lt.s32.totalorder %v86, 0
      %vm149 = vcmp.lt.s32.totalorder %v115, 0
      %vm150 = vcmp.lt.s32.totalorder %v144, 0
      %vm151 = vmand %vm148, %vm145
      %vm152 = vmand %vm149, %vm146
      %vm153 = vmand %vm150, %vm147
      %v154 = vadd.s32 %v86, 3
      %v155 = vadd.s32 %v115, 3
      %v156 = vadd.s32 %v144, 3
      %v157 = vsel %vm151, %v154, %v86
      %v158 = vsel %vm152, %v155, %v115
      %v159 = vsel %vm153, %v156, %v144
      %vm160 = vcmp.eq.s32.totalorder %v157, 0
      %vm161 = vcmp.eq.s32.totalorder %v158, 0
      %vm162 = vcmp.eq.s32.totalorder %v159, 0
      %v163 = vsel %vm160, 1, 0
      %v164 = vsel %vm161, 1, 0
      %v165 = vsel %vm162, 1, 0
      %vm166 = vcmp.eq.s32.totalorder %v163, 1
      %vm167 = vcmp.eq.s32.totalorder %v164, 1
      %vm168 = vcmp.eq.s32.totalorder %v165, 1
      %170 = vst [vmem:[#allocation1] ss:$4 sm:$0xff] %v53
      %v171 = vld.sshfl [vmem:[#allocation1] sm:$0xff pattern:$0x73625140]
      %v172 = vld.sshfl [vmem:[#allocation1 + $0x8] sm:$0xff pattern:$0x73625140]
      %v173 = vld.sshfl [vmem:[#allocation1 + $0x10] sm:$0xff pattern:$0x73625140]
      %v177 = vsel %vm166, %v171, 0.0
      %v178 = vsel %vm167, %v172, 0.0
      %v179 = vsel %vm168, %v173, 0.0
      %vm180 = vcmask 1041408
      %v181 = vsel %vm180, %v177, 0.0
      %v182 = vsel %vm180, %v178, 0.0
      %v183 = vadd.f32 %v181, %v182
      %v184 = vsel %vm180, %v179, 0.0
      %v185 = vadd.f32 %v183, %v184
      %186 = vadd.xlane.f32.xlu0 %v185
      %v187 = vpop.xlane.xlu0 %186
      %vm188 = vcmp.eq.s32.totalorder %v157, 1
      %vm189 = vcmp.eq.s32.totalorder %v158, 1
      %vm190 = vcmp.eq.s32.totalorder %v159, 1
      %v191 = vsel %vm188, 1, 0
      %v192 = vsel %vm189, 1, 0
      %v193 = vsel %vm190, 1, 0
      %vm194 = vcmp.eq.s32.totalorder %v191, 1
      %vm195 = vcmp.eq.s32.totalorder %v192, 1
      %vm196 = vcmp.eq.s32.totalorder %v193, 1
      %197 = vst [vmem:[#allocation1] ss:$4 sm:$0xff] %v53
      %v198 = vld.sshfl [vmem:[#allocation1] sm:$0xff pattern:$0x73625140]
      %v199 = vld.sshfl [vmem:[#allocation1 + $0x8] sm:$0xff pattern:$0x73625140]
      %v200 = vld.sshfl [vmem:[#allocation1 + $0x10] sm:$0xff pattern:$0x73625140]
      %v204 = vsel %vm194, %v198, 0.0
      %v205 = vsel %vm195, %v199, 0.0
      %v206 = vsel %vm196, %v200, 0.0
      %v207 = vsel %vm180, %v204, 0.0
      %v208 = vsel %vm180, %v205, 0.0
      %v209 = vadd.f32 %v207, %v208
      %v210 = vsel %vm180, %v206, 0.0
      %v211 = vadd.f32 %v209, %v210
      %212 = vadd.xlane.f32.xlu0 %v211
      %v213 = vpop.xlane.xlu0 %212
      %vm214 = vcmp.eq.s32.totalorder %v157, 2
      %vm215 = vcmp.eq.s32.totalorder %v158, 2
      %vm216 = vcmp.eq.s32.totalorder %v159, 2
      %v217 = vsel %vm214, 1, 0
      %v218 = vsel %vm215, 1, 0
      %v219 = vsel %vm216, 1, 0
      %vm220 = vcmp.eq.s32.totalorder %v217, 1
      %vm221 = vcmp.eq.s32.totalorder %v218, 1
      %vm222 = vcmp.eq.s32.totalorder %v219, 1
      %223 = vst [vmem:[#allocation1] ss:$4 sm:$0xff] %v53
      %v224 = vld.sshfl [vmem:[#allocation1] sm:$0xff pattern:$0x73625140]
      %v225 = vld.sshfl [vmem:[#allocation1 + $0x8] sm:$0xff pattern:$0x73625140]
      %v226 = vld.sshfl [vmem:[#allocation1 + $0x10] sm:$0xff pattern:$0x73625140]
      %v230 = vsel %vm220, %v224, 0.0
      %v231 = vsel %vm221, %v225, 0.0
      %v232 = vsel %vm222, %v226, 0.0
      %v233 = vsel %vm180, %v230, 0.0
      %v234 = vsel %vm180, %v231, 0.0
      %v235 = vadd.f32 %v233, %v234
      %v236 = vsel %vm180, %v232, 0.0
      %v237 = vadd.f32 %v235, %v236
      %238 = vadd.xlane.f32.xlu0 %v237
      %v239 = vpop.xlane.xlu0 %238
      %v240 = vld [vmem:[#allocation2] sm:$0x3]
      %vm241 = vcmask 7168
      %v242 = vsel %vm241, %v187, %v213
      %vm243 = vcmask 15360
      %v244 = vsel %vm243, %v242, %v239
      %v245 = vadd.f32 %v240, %v244
      %vm246 = vcmask 17408
      %247 = vst.msk [vmem:[#allocation2] sm:$0x3] %vm246, %v245
    $region17: #{tpu_custom_call.1} parent=1 // pred_fallthru
      _
    %p248 = scmp.gt.s32.totalorder %s48, 48
    // Predicated region
    $region18: #{tpu_custom_call.1} parent=1 // pred_check
      %p249 = pneg %p248
    $region19: #{tpu_custom_call.1} parent=1 // pred_check_branch
      %251 = sbr.rel (%p249) target = $region21
    $region20: #{tpu_custom_call.1} parent=1 // pred_region
      %v252 = vlaneseq
      %v253 = vand.u32 %v252, 127
      %v254 = vadd.s32 %v253, 128
      %v255 = vadd.s32 %v253, 256
      %v256 = vstv %s47
      %v257 = vadd.s32 %v256, %v253
      %v258 = vadd.s32 %v256, %v254
      %v259 = vadd.s32 %v256, %v255
      %vm260 = vcmp.lt.s32.totalorder %v257, 48
      %vm261 = vcmp.lt.s32.totalorder %v258, 48
      %vm262 = vcmp.lt.s32.totalorder %v259, 48
      %v263 = vld [vmem:[#allocation3] sm:$0x3f]
      %v264 = vsel %vm260, 1, 0
      %v265 = vsel %vm261, 1, 0
      %v266 = vsel %vm262, 1, 0
      %vm267 = vcmp.eq.s32.totalorder %v264, 1
      %vm268 = vcmp.eq.s32.totalorder %v265, 1
      %vm269 = vcmp.eq.s32.totalorder %v266, 1
      %271 = vst [vmem:[#allocation1] ss:$4 sm:$0xff] %v263
      %v272 = vld.sshfl [vmem:[#allocation1] sm:$0xff pattern:$0x73625140]
      %v273 = vld.sshfl [vmem:[#allocation1 + $0x8] sm:$0xff pattern:$0x73625140]
      %v274 = vld.sshfl [vmem:[#allocation1 + $0x10] sm:$0xff pattern:$0x73625140]
      %v278 = vsel %vm267, %v272, 0.0
      %v279 = vsel %vm268, %v273, 0.0
      %v280 = vsel %vm269, %v274, 0.0
      %vm281 = vcmp.lt.s32.totalorder %v253, 0
      %v282 = vsub.s32 0, %v253
      %v283 = vsel %vm281, %v282, %v253
      %v284 = vand.u32 %v283, 65535
      %v285 = vshrl.u32 %v283, 16
      %v287 = vmul.u32 %v284, 43691
      %v288 = vmul.u32 %v284, 43690
      %v289 = vmul.u32 %v285, 43691
      %v290 = vmul.u32 %v285, 43690
      %v291 = vshll.u32 %v288, 16
      %v292 = vshrl.u32 %v288, 16
      %v293 = vshll.u32 %v289, 16
      %v294 = vshrl.u32 %v289, 16
      %vm295 = vc.u32 %v287, %v291
      %v296 = vsel %vm295, 1, 0
      %v297 = vadd.s32 %v287, %v291
      %v298 = vadd.s32 %v290, %v296
      %vm299 = vc.u32 %v297, %v293
      %v300 = vsel %vm299, 1, 0
      %v301 = vadd.s32 %v297, %v293
      %v302 = vadd.s32 %v298, %v300
      %v303 = vadd.s32 %v302, %v292
      %v304 = vadd.s32 %v303, %v294
      %v305 = vshrl.u32 %v304, 1
      %v306 = vmul.u32 %v305, 3
      %v307 = vsub.s32 %v283, %v306
      %v308 = vsub.s32 0, %v307
      %v309 = vsel %vm281, %v308, %v307
      %vm310 = vcmp.lt.s32.totalorder %v254, 0
      %v311 = vsub.s32 0, %v254
      %v312 = vsel %vm310, %v311, %v254
      %v313 = vand.u32 %v312, 65535
      %v314 = vshrl.u32 %v312, 16
      %v316 = vmul.u32 %v313, 43691
      %v317 = vmul.u32 %v313, 43690
      %v318 = vmul.u32 %v314, 43691
      %v319 = vmul.u32 %v314, 43690
      %v320 = vshll.u32 %v317, 16
      %v321 = vshrl.u32 %v317, 16
      %v322 = vshll.u32 %v318, 16
      %v323 = vshrl.u32 %v318, 16
      %vm324 = vc.u32 %v316, %v320
      %v325 = vsel %vm324, 1, 0
      %v326 = vadd.s32 %v316, %v320
      %v327 = vadd.s32 %v319, %v325
      %vm328 = vc.u32 %v326, %v322
      %v329 = vsel %vm328, 1, 0
      %v330 = vadd.s32 %v326, %v322
      %v331 = vadd.s32 %v327, %v329
      %v332 = vadd.s32 %v331, %v321
      %v333 = vadd.s32 %v332, %v323
      %v334 = vshrl.u32 %v333, 1
      %v335 = vmul.u32 %v334, 3
      %v336 = vsub.s32 %v312, %v335
      %v337 = vsub.s32 0, %v336
      %v338 = vsel %vm310, %v337, %v336
      %vm339 = vcmp.lt.s32.totalorder %v255, 0
      %v340 = vsub.s32 0, %v255
      %v341 = vsel %vm339, %v340, %v255
      %v342 = vand.u32 %v341, 65535
      %v343 = vshrl.u32 %v341, 16
      %v345 = vmul.u32 %v342, 43691
      %v346 = vmul.u32 %v342, 43690
      %v347 = vmul.u32 %v343, 43691
      %v348 = vmul.u32 %v343, 43690
      %v349 = vshll.u32 %v346, 16
      %v350 = vshrl.u32 %v346, 16
      %v351 = vshll.u32 %v347, 16
      %v352 = vshrl.u32 %v347, 16
      %vm353 = vc.u32 %v345, %v349
      %v354 = vsel %vm353, 1, 0
      %v355 = vadd.s32 %v345, %v349
      %v356 = vadd.s32 %v348, %v354
      %vm357 = vc.u32 %v355, %v351
      %v358 = vsel %vm357, 1, 0
      %v359 = vadd.s32 %v355, %v351
      %v360 = vadd.s32 %v356, %v358
      %v361 = vadd.s32 %v360, %v350
      %v362 = vadd.s32 %v361, %v352
      %v363 = vshrl.u32 %v362, 1
      %v364 = vmul.u32 %v363, 3
      %v365 = vsub.s32 %v341, %v364
      %v366 = vsub.s32 0, %v365
      %v367 = vsel %vm339, %v366, %v365
      %vm368 = vcmp.ne.s32.totalorder %v309, 0
      %vm369 = vcmp.ne.s32.totalorder %v338, 0
      %vm370 = vcmp.ne.s32.totalorder %v367, 0
      %vm371 = vcmp.lt.s32.totalorder %v309, 0
      %vm372 = vcmp.lt.s32.totalorder %v338, 0
      %vm373 = vcmp.lt.s32.totalorder %v367, 0
      %vm374 = vmand %vm371, %vm368
      %vm375 = vmand %vm372, %vm369
      %vm376 = vmand %vm373, %vm370
      %v377 = vadd.s32 %v309, 3
      %v378 = vadd.s32 %v338, 3
      %v379 = vadd.s32 %v367, 3
      %v380 = vsel %vm374, %v377, %v309
      %v381 = vsel %vm375, %v378, %v338
      %v382 = vsel %vm376, %v379, %v367
      %vm383 = vcmp.eq.s32.totalorder %v380, 0
      %vm384 = vcmp.eq.s32.totalorder %v381, 0
      %vm385 = vcmp.eq.s32.totalorder %v382, 0
      %v386 = vsel %vm383, 1, 0
      %v387 = vsel %vm384, 1, 0
      %v388 = vsel %vm385, 1, 0
      %vm389 = vcmp.eq.s32.totalorder %v386, 1
      %vm390 = vcmp.eq.s32.totalorder %v387, 1
      %vm391 = vcmp.eq.s32.totalorder %v388, 1
      %v392 = vsel %vm389, %v278, 0.0
      %v393 = vsel %vm390, %v279, 0.0
      %v394 = vsel %vm391, %v280, 0.0
      %vm395 = vcmask 1041408
      %v396 = vsel %vm395, %v392, 0.0
      %v397 = vsel %vm395, %v393, 0.0
      %v398 = vadd.f32 %v396, %v397
      %v399 = vsel %vm395, %v394, 0.0
      %v400 = vadd.f32 %v398, %v399
      %401 = vadd.xlane.f32.xlu0 %v400
      %v402 = vpop.xlane.xlu0 %401
      %vm403 = vcmp.eq.s32.totalorder %v380, 1
      %vm404 = vcmp.eq.s32.totalorder %v381, 1
      %vm405 = vcmp.eq.s32.totalorder %v382, 1
      %v406 = vsel %vm403, 1, 0
      %v407 = vsel %vm404, 1, 0
      %v408 = vsel %vm405, 1, 0
      %vm409 = vcmp.eq.s32.totalorder %v406, 1
      %vm410 = vcmp.eq.s32.totalorder %v407, 1
      %vm411 = vcmp.eq.s32.totalorder %v408, 1
      %v412 = vsel %vm409, %v278, 0.0
      %v413 = vsel %vm410, %v279, 0.0
      %v414 = vsel %vm411, %v280, 0.0
      %v415 = vsel %vm395, %v412, 0.0
      %v416 = vsel %vm395, %v413, 0.0
      %v417 = vadd.f32 %v415, %v416
      %v418 = vsel %vm395, %v414, 0.0
      %v419 = vadd.f32 %v417, %v418
      %420 = vadd.xlane.f32.xlu0 %v419
      %v421 = vpop.xlane.xlu0 %420
      %vm422 = vcmp.eq.s32.totalorder %v380, 2
      %vm423 = vcmp.eq.s32.totalorder %v381, 2
      %vm424 = vcmp.eq.s32.totalorder %v382, 2
      %v425 = vsel %vm422, 1, 0
      %v426 = vsel %vm423, 1, 0
      %v427 = vsel %vm424, 1, 0
      %vm428 = vcmp.eq.s32.totalorder %v425, 1
      %vm429 = vcmp.eq.s32.totalorder %v426, 1
      %vm430 = vcmp.eq.s32.totalorder %v427, 1
      %v431 = vsel %vm428, %v278, 0.0
      %v432 = vsel %vm429, %v279, 0.0
      %v433 = vsel %vm430, %v280, 0.0
      %v434 = vsel %vm395, %v431, 0.0
      %v435 = vsel %vm395, %v432, 0.0
      %v436 = vadd.f32 %v434, %v435
      %v437 = vsel %vm395, %v433, 0.0
      %v438 = vadd.f32 %v436, %v437
      %439 = vadd.xlane.f32.xlu0 %v438
      %v440 = vpop.xlane.xlu0 %439
      %v441 = vld [vmem:[#allocation2] sm:$0x3]
      %vm442 = vcmask 7168
      %v443 = vsel %vm442, %v402, %v421
      %vm444 = vcmask 15360
      %v445 = vsel %vm444, %v443, %v440
      %v446 = vadd.f32 %v441, %v445
      %vm447 = vcmask 17408
      %448 = vst.msk [vmem:[#allocation2] sm:$0x3] %vm447, %v446
    $region21: #{tpu_custom_call.1} parent=1 // pred_fallthru
      _
    // Predicated region
    $region22: #{tpu_custom_call.1} parent=1 // pred_check
      %p449 = pneg %p40
    $region23: #{tpu_custom_call.1} parent=1 // pred_check_branch
      %451 = sbr.rel (%p449) target = $region25
    $region24: #{tpu_custom_call.1} parent=1 // pred_region
      %v452 = vld [vmem:[#allocation2] sm:$0x3]
      %v453 = vmul.f32 %v452, 0.0625
      %vm454 = vcmask 17408
      %455 = vst.msk [vmem:[#allocation6] sm:$0x3] %vm454, %v453
    $region25: #{tpu_custom_call.1} parent=1 // pred_fallthru
      _
    // Predicated region
    $region26: #{tpu_custom_call.1} parent=1 // pred_check
      _
    $region27: #{tpu_custom_call.1} parent=1 // pred_check_branch
      %457 = sbr.rel (0) target = $region29
    $region28: #{tpu_custom_call.1} parent=1 // pred_region
      %459 = vsyncadd [#allocation5], 0
      %s461 = sshll.u32 [#allocation6], 4
      %s462 = int_to_ptr.vmem [resolvable:$true] %s461
      %s463 = sshll.u32 %s1, 4
      %s464 = int_to_ptr.hbm [resolvable:$true] %s463
      %466 = dma.vmem_to_hbm [thread:$0]  %s462, 32, %s464, [#allocation5]
    $region29: #{tpu_custom_call.1} parent=1 // pred_fallthru
      _
    // Predicated region
    $region30: #{tpu_custom_call.1} parent=1 // pred_check
      _
    $region31: #{tpu_custom_call.1} parent=1 // pred_check_branch
      %468 = sbr.rel (0) target = $region33
    $region32: #{tpu_custom_call.1} parent=1 // pred_region
      %470 = dma.done [#allocation5], 32
    $region33: #{tpu_custom_call.1} parent=1 // pred_fallthru
      _
    %471 = vsyncpa [#allocation4], 1
    %472 = vsyncpa [#allocation5], 1

</llo_original>
